<compile_context>
chip_gen: v7x
topology: tpu7x:2x2x1
jax: 0.10.0
libtpu: 0.0.40
codegen_flags: <defaults>
</compile_context>

<pallas_src>
import functools

import jax
import jax.numpy as jnp
from jax.experimental import pallas as pl
from jax.experimental.pallas import tpu as pltpu


def _dice_stats_kernel(x_ref, sum_ref, sq_ref, *, tile_rows, valid_rows,
                       needs_mask):
    """Pass 1: accumulate per-lane sum and sum-of-squares across N tiles."""
    i = pl.program_id(0)
    x = x_ref[...].astype(jnp.float32)
    if needs_mask:
        # Last tile may be padded with garbage rows; zero them out.
        rows = i * tile_rows + jax.lax.broadcasted_iota(jnp.int32, x.shape, 0)
        x = jnp.where(rows < valid_rows, x, 0.0)
    s = jnp.sum(x, axis=0, keepdims=True)
    sq = jnp.sum(x * x, axis=0, keepdims=True)

    @pl.when(i == 0)
    def _():
        sum_ref[...] = s
        sq_ref[...] = sq

    @pl.when(i > 0)
    def _():
        sum_ref[...] = sum_ref[...] + s
        sq_ref[...] = sq_ref[...] + sq


def _dice_apply_kernel(x_ref, coef_ref, o_ref):
    """Pass 2: out = x * (alpha + sigmoid(x*scale + shift) * (1 - alpha))."""
    x = x_ref[...].astype(jnp.float32)
    scale = coef_ref[0:1, :]
    shift = coef_ref[1:2, :]
    alpha = coef_ref[2:3, :]
    one_minus_alpha = coef_ref[3:4, :]
    p = jax.nn.sigmoid(x * scale + shift)          # EUP slot
    o_ref[...] = (x * (alpha + p * one_minus_alpha)).astype(o_ref.dtype)


@functools.partial(jax.jit, static_argnames=("eps", "tile_rows"))
def _dice_2d(x2d, gamma, beta, alpha, *, eps, tile_rows=None):
    """Dice on a 2D slab (N, E); channel / emb axis is last (lane axis)."""
    n, e = x2d.shape
    out_dtype = x2d.dtype

    # ---- lane packing: fold k rows into the lane axis so lanes are dense ----
    k = 128 // e if (e < 128 and 128 % e == 0) else 1
    pad = (-n) % k
    xw = jnp.pad(x2d, ((0, pad), (0, 0))) if pad else x2d
    np_rows = (n + pad) // k
    ep = k * e
    xp = xw.reshape(np_rows, ep)

    # ---- row-tile size: multiple of 8, ~12 MiB worst-case VMEM footprint ----
    if tile_rows is None:
        budget = 12 << 20                  # safe under v5e's 16 MiB scoped VMEM
        tn = budget // (4 * ep * 4)        # 2 double-buffered f32 streams
        tn = min(2048, max(8, (tn // 8) * 8))
    else:
        tn = int(tile_rows)                # test hook; must be a multiple of 8
    if np_rows <= tn:
        tn = np_rows                       # single tile; block == full array dim
    nt = pl.cdiv(np_rows, tn)
    needs_mask = (np_rows % tn) != 0

    # ---- pass 1: per-lane sum / sum-of-squares (sequential accumulation) ----
    stats_kernel = functools.partial(
        _dice_stats_kernel, tile_rows=tn, valid_rows=np_rows,
        needs_mask=needs_mask)
    s_sum, s_sq = pl.pallas_call(
        stats_kernel,
        out_shape=(jax.ShapeDtypeStruct((1, ep), jnp.float32),
                   jax.ShapeDtypeStruct((1, ep), jnp.float32)),
        grid=(nt,),
        in_specs=[pl.BlockSpec((tn, ep), lambda i: (i, 0))],
        out_specs=(pl.BlockSpec((1, ep), lambda i: (0, 0)),
                   pl.BlockSpec((1, ep), lambda i: (0, 0))),
        compiler_params=pltpu.CompilerParams(
            dimension_semantics=("arbitrary",)),
    )(xp)

    # ---- tiny glue: fold packed lanes, BN stats -> per-channel coefficients --
    sum_e = s_sum.reshape(k, e).sum(axis=0)        # (E,)
    sq_e = s_sq.reshape(k, e).sum(axis=0)          # (E,)
    n_f = float(n)                                 # true row count (zero pads
    mean = sum_e / n_f                             #  contribute nothing)
    var = jnp.maximum(sq_e / n_f - mean * mean, 0.0)   # biased var, clamped
    g = gamma.reshape(-1).astype(jnp.float32)
    b = beta.reshape(-1).astype(jnp.float32)
    a = alpha.reshape(-1).astype(jnp.float32)
    scale = g * jax.lax.rsqrt(var + eps)
    shift = b - mean * scale
    coef = jnp.stack([scale, shift, a, 1.0 - a], axis=0)   # (4, E)
    coef_p = jnp.tile(coef, (1, k))                         # (4, Ep) packed

    # ---- pass 2: elementwise apply (parallel tiles -> v7x dual TensorCore) ---
    out_p = pl.pallas_call(
        _dice_apply_kernel,
        out_shape=jax.ShapeDtypeStruct((np_rows, ep), out_dtype),
        grid=(nt,),
        in_specs=[pl.BlockSpec((tn, ep), lambda i: (i, 0)),
                  pl.BlockSpec((4, ep), lambda i: (0, 0))],
        out_specs=pl.BlockSpec((tn, ep), lambda i: (i, 0)),
        compiler_params=pltpu.CompilerParams(
            dimension_semantics=("parallel",)),
    )(xp, coef_p)

    out = out_p.reshape(np_rows * k, e)
    if pad:
        out = out[:n]
    return out


def dice(x, gamma, beta, alpha, *, dim=2, eps=1e-8, tile_rows=None):
    """JAX/Pallas equivalent of Dice.forward (training-mode BatchNorm1d)."""
    assert dim in (2, 3)
    if dim == 2:
        assert x.ndim == 2
        return _dice_2d(x, gamma, beta, alpha, eps=eps, tile_rows=tile_rows)
    assert x.ndim == 3
    b, l, e = x.shape
    # PyTorch: transpose(1,2) -> BN1d over channel E with stats over (B, L)
    # -> transpose back.  Equivalent to flattening (B, L) into one axis.
    x2d = x.reshape(b * l, e)
    out2d = _dice_2d(x2d, gamma, beta, alpha, eps=eps, tile_rows=tile_rows)
    return out2d.reshape(b, l, e)


def dice_reference(x, gamma, beta, alpha, *, dim=2, eps=1e-8):
    """Pure-JAX reference mirroring the PyTorch forward exactly."""
    if dim == 3:
        b, l, e = x.shape
        x2d = x.reshape(b * l, e)
    else:
        x2d = x
    mean = jnp.mean(x2d, axis=0, keepdims=True)
    var = jnp.mean((x2d - mean) ** 2, axis=0, keepdims=True)
    x_hat = (x2d - mean) / jnp.sqrt(var + eps)
    x_bn = x_hat * gamma.reshape(1, -1) + beta.reshape(1, -1)
    x_p = jax.nn.sigmoid(x_bn)
    out = alpha.reshape(1, -1) * (1.0 - x_p) * x2d + x_p * x2d
    return out.reshape(x.shape)


if __name__ == "__main__":
    key = jax.random.PRNGKey(0)
    k1, k2, k3, k4, k5 = jax.random.split(key, 5)

    emb_size = 32
    # BatchNorm1d defaults: weight=ones, bias=zeros; alpha default is zeros but
    # is perturbed deterministically so the alpha branch is exercised too.
    gamma = jnp.ones((emb_size,), jnp.float32)
    beta = jnp.zeros((emb_size,), jnp.float32)
    alpha = 0.25 * jax.random.normal(k3, (emb_size,), jnp.float32)

    # dim == 2 : (B, E), lane-packed (k = 4), single row tile.
    x2 = jax.random.normal(k1, (8, emb_size), jnp.float32)
    out2 = jax.block_until_ready(dice(x2, gamma, beta, alpha, dim=2))
    ref2 = dice_reference(x2, gamma, beta, alpha, dim=2)
    assert jnp.allclose(out2, ref2, atol=1e-5, rtol=1e-5)

    # dim == 3 : (B, L, E)  (PyTorch layout before the internal transpose).
    x3 = jax.random.normal(k2, (2, 8, emb_size), jnp.float32)
    out3 = jax.block_until_ready(dice(x3, gamma, beta, alpha, dim=3))
    ref3 = dice_reference(x3, gamma, beta, alpha, dim=3)
    assert jnp.allclose(out3, ref3, atol=1e-5, rtol=1e-5)

    # Multi-tile path: 40 rows, k=4 -> 10 packed rows, tile_rows=8 -> 2 tiles;
    # exercises the cross-tile accumulator and the padded-edge-row mask.
    x4 = jax.random.normal(k4, (40, emb_size), jnp.float32)
    out4 = jax.block_until_ready(
        dice(x4, gamma, beta, alpha, dim=2, tile_rows=8))
    ref4 = dice_reference(x4, gamma, beta, alpha, dim=2)
    assert jnp.allclose(out4, ref4, atol=1e-5, rtol=1e-5)

    # Unpacked path: E = 160 (128 % E != 0), single tile.
    e5 = 160
    gamma5 = jnp.ones((e5,), jnp.float32)
    beta5 = jnp.zeros((e5,), jnp.float32)
    alpha5 = 0.25 * jax.random.normal(k5, (e5,), jnp.float32)
    x5 = jax.random.normal(k5, (16, e5), jnp.float32)
    out5 = jax.block_until_ready(dice(x5, gamma5, beta5, alpha5, dim=2))
    ref5 = dice_reference(x5, gamma5, beta5, alpha5, dim=2)
    assert jnp.allclose(out5, ref5, atol=1e-5, rtol=1e-5)

    print("KERNEL_OK")
</pallas_src>

<mosaic_0001>
module attributes {stable_mosaic.version = 11 : i64} {
  func.func @_dice_stats_kernel(%arg0: i32, %arg1: memref<2x128xf32, #tpu.memory_space<vmem>>, %arg2: memref<1x128xf32, #tpu.memory_space<vmem>>, %arg3: memref<1x128xf32, #tpu.memory_space<vmem>>) attributes {dimension_semantics = [#tpu.dimension_semantics<arbitrary>], iteration_bounds = array<i64: 1>, scalar_prefetch = 0 : i64, scratch_operands = 0 : i64, tpu.core_type = #tpu.core_type<tc>, window_params = [{transform_indices = @transform_0, window_bounds = array<i64: 2, 128>}, {pipeline_mode = #tpu.pipeline_mode<synchronous>, transform_indices = @transform_1, window_bounds = array<i64: 1, 128>}, {pipeline_mode = #tpu.pipeline_mode<synchronous>, transform_indices = @transform_2, window_bounds = array<i64: 1, 128>}]} {
    %c0 = arith.constant 0 : index
    %c0_0 = arith.constant 0 : index
    %0 = vector.load %arg1[%c0, %c0_0] : memref<2x128xf32, #tpu.memory_space<vmem>>, vector<2x128xf32>
    %cst = arith.constant dense<0.000000e+00> : vector<128xf32>
    %1 = vector.multi_reduction <add>, %0, %cst [0] : vector<2x128xf32> to vector<128xf32>
    %2 = vector.shape_cast %1 : vector<128xf32> to vector<1x128xf32>
    %3 = arith.mulf %0, %0 : vector<2x128xf32>
    %cst_1 = arith.constant dense<0.000000e+00> : vector<128xf32>
    %4 = vector.multi_reduction <add>, %3, %cst_1 [0] : vector<2x128xf32> to vector<128xf32>
    %5 = vector.shape_cast %4 : vector<128xf32> to vector<1x128xf32>
    %c0_i32 = arith.constant 0 : i32
    %6 = arith.cmpi eq, %arg0, %c0_i32 : i32
    %7 = arith.extui %6 : i1 to i32
    %c0_i32_2 = arith.constant 0 : i32
    %8 = arith.cmpi ne, %7, %c0_i32_2 : i32
    scf.if %8 {
      %c0_5 = arith.constant 0 : index
      %c0_6 = arith.constant 0 : index
      %12 = vector.load %arg2[%c0_5, %c0_6] : memref<1x128xf32, #tpu.memory_space<vmem>>, vector<1x128xf32>
      tpu.vector_store %arg2[%c0_5, %c0_6], %2 {strides = array<i32>} : memref<1x128xf32, #tpu.memory_space<vmem>>, vector<1x128xf32>,
      %c0_7 = arith.constant 0 : index
      %c0_8 = arith.constant 0 : index
      %13 = vector.load %arg3[%c0_7, %c0_8] : memref<1x128xf32, #tpu.memory_space<vmem>>, vector<1x128xf32>
      tpu.vector_store %arg3[%c0_7, %c0_8], %5 {strides = array<i32>} : memref<1x128xf32, #tpu.memory_space<vmem>>, vector<1x128xf32>,
    } else {
    }
    %c0_i32_3 = arith.constant 0 : i32
    %9 = arith.cmpi sgt, %arg0, %c0_i32_3 : i32
    %10 = arith.extui %9 : i1 to i32
    %c0_i32_4 = arith.constant 0 : i32
    %11 = arith.cmpi ne, %10, %c0_i32_4 : i32
    scf.if %11 {
      %c0_5 = arith.constant 0 : index
      %c0_6 = arith.constant 0 : index
      %12 = vector.load %arg2[%c0_5, %c0_6] : memref<1x128xf32, #tpu.memory_space<vmem>>, vector<1x128xf32>
      %13 = arith.addf %12, %2 : vector<1x128xf32>
      %c0_7 = arith.constant 0 : index
      %c0_8 = arith.constant 0 : index
      %14 = vector.load %arg2[%c0_7, %c0_8] : memref<1x128xf32, #tpu.memory_space<vmem>>, vector<1x128xf32>
      tpu.vector_store %arg2[%c0_7, %c0_8], %13 {strides = array<i32>} : memref<1x128xf32, #tpu.memory_space<vmem>>, vector<1x128xf32>,
      %c0_9 = arith.constant 0 : index
      %c0_10 = arith.constant 0 : index
      %15 = vector.load %arg3[%c0_9, %c0_10] : memref<1x128xf32, #tpu.memory_space<vmem>>, vector<1x128xf32>
      %16 = arith.addf %15, %5 : vector<1x128xf32>
      %c0_11 = arith.constant 0 : index
      %c0_12 = arith.constant 0 : index
      %17 = vector.load %arg3[%c0_11, %c0_12] : memref<1x128xf32, #tpu.memory_space<vmem>>, vector<1x128xf32>
      tpu.vector_store %arg3[%c0_11, %c0_12], %16 {strides = array<i32>} : memref<1x128xf32, #tpu.memory_space<vmem>>, vector<1x128xf32>,
    } else {
    }
    return
  }
  func.func @transform_0(%arg0: i32) -> (i32, i32) {
    %c0_i32 = arith.constant 0 : i32
    %c0_i32_0 = arith.constant 0 : i32
    return %arg0, %c0_i32 : i32, i32
  }
  func.func @transform_1(%arg0: i32) -> (i32, i32) {
    %c0_i32 = arith.constant 0 : i32
    %c0_i32_0 = arith.constant 0 : i32
    %c0_i32_1 = arith.constant 0 : i32
    return %c0_i32, %c0_i32_0 : i32, i32
  }
  func.func @transform_2(%arg0: i32) -> (i32, i32) {
    %c0_i32 = arith.constant 0 : i32
    %c0_i32_0 = arith.constant 0 : i32
    %c0_i32_1 = arith.constant 0 : i32
    return %c0_i32, %c0_i32_0 : i32, i32
  }
}

module attributes {stable_mosaic.version = 11 : i64} {
  func.func @_dice_apply_kernel(%arg0: i32, %arg1: memref<2x128xf32, #tpu.memory_space<vmem>>, %arg2: memref<4x128xf32, #tpu.memory_space<vmem>>, %arg3: memref<2x128xf32, #tpu.memory_space<vmem>>) attributes {dimension_semantics = [#tpu.dimension_semantics<parallel>], iteration_bounds = array<i64: 1>, scalar_prefetch = 0 : i64, scratch_operands = 0 : i64, tpu.core_type = #tpu.core_type<tc>, window_params = [{transform_indices = @transform_0, window_bounds = array<i64: 2, 128>}, {pipeline_mode = #tpu.pipeline_mode<synchronous>, transform_indices = @transform_1, window_bounds = array<i64: 4, 128>}, {transform_indices = @transform_2, window_bounds = array<i64: 2, 128>}]} {
    %c0 = arith.constant 0 : index
    %c0_0 = arith.constant 0 : index
    %0 = vector.load %arg1[%c0, %c0_0] : memref<2x128xf32, #tpu.memory_space<vmem>>, vector<2x128xf32>
    %c0_1 = arith.constant 0 : index
    %c0_2 = arith.constant 0 : index
    %1 = vector.load %arg2[%c0_1, %c0_2] : memref<4x128xf32, #tpu.memory_space<vmem>>, vector<1x128xf32>
    %c1 = arith.constant 1 : index
    %c0_3 = arith.constant 0 : index
    %2 = vector.load %arg2[%c1, %c0_3] : memref<4x128xf32, #tpu.memory_space<vmem>>, vector<1x128xf32>
    %c2 = arith.constant 2 : index
    %c0_4 = arith.constant 0 : index
    %3 = vector.load %arg2[%c2, %c0_4] : memref<4x128xf32, #tpu.memory_space<vmem>>, vector<1x128xf32>
    %c3 = arith.constant 3 : index
    %c0_5 = arith.constant 0 : index
    %4 = vector.load %arg2[%c3, %c0_5] : memref<4x128xf32, #tpu.memory_space<vmem>>, vector<1x128xf32>
    %5 = vector.broadcast %1 : vector<1x128xf32> to vector<2x128xf32>
    %6 = arith.mulf %0, %5 : vector<2x128xf32>
    %7 = vector.broadcast %2 : vector<1x128xf32> to vector<2x128xf32>
    %8 = arith.addf %6, %7 : vector<2x128xf32>
    %9 = arith.negf %8 : vector<2x128xf32>
    %10 = math.exp %9 : vector<2x128xf32>
    %cst = arith.constant 1.000000e+00 : f32
    %11 = vector.broadcast %cst : f32 to vector<2x128xf32>
    %12 = arith.addf %11, %10 : vector<2x128xf32>
    %13 = arith.divf %11, %12 : vector<2x128xf32>
    %14 = vector.broadcast %4 : vector<1x128xf32> to vector<2x128xf32>
    %15 = arith.mulf %13, %14 : vector<2x128xf32>
    %16 = vector.broadcast %3 : vector<1x128xf32> to vector<2x128xf32>
    %17 = arith.addf %16, %15 : vector<2x128xf32>
    %18 = arith.mulf %0, %17 : vector<2x128xf32>
    %c0_6 = arith.constant 0 : index
    %c0_7 = arith.constant 0 : index
    %19 = vector.load %arg3[%c0_6, %c0_7] : memref<2x128xf32, #tpu.memory_space<vmem>>, vector<2x128xf32>
    tpu.vector_store %arg3[%c0_6, %c0_7], %18 {strides = array<i32>} : memref<2x128xf32, #tpu.memory_space<vmem>>, vector<2x128xf32>,
    return
  }
  func.func @transform_0(%arg0: i32) -> (i32, i32) {
    %c0_i32 = arith.constant 0 : i32
    %c0_i32_0 = arith.constant 0 : i32
    return %arg0, %c0_i32 : i32, i32
  }
  func.func @transform_1(%arg0: i32) -> (i32, i32) {
    %c0_i32 = arith.constant 0 : i32
    %c0_i32_0 = arith.constant 0 : i32
    %c0_i32_1 = arith.constant 0 : i32
    return %c0_i32, %c0_i32_0 : i32, i32
  }
  func.func @transform_2(%arg0: i32) -> (i32, i32) {
    %c0_i32 = arith.constant 0 : i32
    %c0_i32_0 = arith.constant 0 : i32
    return %arg0, %c0_i32 : i32, i32
  }
}

</mosaic_0001>

<llo_original>
// kernel: tile.9
$region0: #{tile.9}
  %s0 = inlined_call_operand.vmem [shape: f32[4,4,32], index: 0, kind: input, shape index: {}]
  %s1 = inlined_call_operand.vmem [shape: f32[4,128], index: 1, kind: output, shape index: {}]
  $region1: #{tile.9} parent=0
    #allocation0 [shape = 'u8[4096]{0}', space=vmem, size = 0x1000, scoped, tag = 'scoped mem for output reshape']
    #allocation1 [shape = 'u8[16384]{0}', space=vmem, size = 0x4000, scoped, tag = 'scoped mem for input reshape']
    %s3 = sshllo.u32 0, 4
    %s4 = smul.addr 4, 3
    %s5 = scalar_lea.vmem %s0, %s4
    %v6 = vld [vmem:[%s5] sm:%s3]
    %s7 = scalar_lea.vmem [#allocation1], 24
    %8 = vst [vmem:[%s7] sm:%s3] %v6
    %s9 = smul.addr 4, 2
    %s10 = scalar_lea.vmem %s0, %s9
    %v11 = vld [vmem:[%s10] sm:%s3]
    %s12 = scalar_lea.vmem [#allocation1], 16
    %13 = vst [vmem:[%s12] sm:%s3] %v11
    %s14 = scalar_lea.vmem %s0, 4
    %v15 = vld [vmem:[%s14] sm:%s3]
    %s16 = scalar_lea.vmem [#allocation1], 8
    %17 = vst [vmem:[%s16] sm:%s3] %v15
    %v18 = vld [vmem:[%s0] sm:%s3]
    %19 = vst [vmem:[#allocation1] sm:%s3] %v18
    %v20 = vld [vmem:[#allocation1] ss:$8 sm:$0xf]
    %vm21 = vcmask 261120
    %22 = vst.msk [vmem:[#allocation0] sm:$0xf] %vm21, %v20
    %s23 = scalar_lea.vmem [#allocation1], 3
    %v24 = vld [vmem:[%s23] ss:$8 sm:$0xf]
    %25 = vrot.lane.b32.xlu0 %v24, 96
    %v26 = vpop.permute.xlu0 %25
    %vm27 = vcmask 1048320
    %28 = vst.msk [vmem:[#allocation0] sm:$0xf] %vm27, %v26
    %s29 = scalar_lea.vmem [#allocation1], 2
    %v30 = vld [vmem:[%s29] ss:$8 sm:$0xf]
    %31 = vrot.lane.b32.xlu0 %v30, 64
    %v32 = vpop.permute.xlu0 %31
    %vm33 = vcmask 785920
    %34 = vst.msk [vmem:[#allocation0] sm:$0xf] %vm33, %v32
    %s35 = scalar_lea.vmem [#allocation1], 1
    %v36 = vld [vmem:[%s35] ss:$8 sm:$0xf]
    %37 = vrot.lane.b32.xlu0 %v36, 32
    %v38 = vpop.permute.xlu0 %37
    %vm39 = vcmask 523520
    %40 = vst.msk [vmem:[#allocation0] sm:$0xf] %vm39, %v38
    %s42 = sshllo.u32 0, 4
    %v44 = vld [vmem:[#allocation0] sm:%s42]
    %s45 = sshllo.u32 0, 4
    %46 = vst [vmem:[%s1] sm:%s45] %v44

// kernel: _dice_2d.2
$region0: #{_dice_2d.2}
  #allocation0 [shape = 'u32[]', space=smem, size = 0x4, offset = 0x4, fixed_abs, tag = 'smem constant byte address 0x4 - core index']
  #allocation1 [shape = 'u32[144,128]{1,0:T(1,128)}', space=vmem, size = 0x12000, scoped, tag = 'internal scratch']
  %s0 = inlined_call_operand.vmem [shape: f32[2,128], index: 0, kind: input, shape index: {}]
  %s1 = inlined_call_operand.vmem [shape: f32[1,128], index: 1, kind: output, shape index: {0}]
  %s2 = inlined_call_operand.vmem [shape: f32[1,128], index: 2, kind: output, shape index: {1}]
  %3 = xla_tuple %s1, %s2
  %s4 = sld [smem:[#allocation0]]
  $region30: #{_dice_2d.2} parent=0
    _
  %s6 = ssub.s32 1, %s4
  %s7 = scalar_select 0, %s6, %s4
  // Predicated region
  $region2: #{_dice_2d.2} parent=0 // pred_check
    _
  $region3: #{_dice_2d.2} parent=0 // pred_check_branch
    %9 = sbr.rel (0) target = $region5
  $region4: #{_dice_2d.2} parent=0 // pred_region
    _
  $region5: #{_dice_2d.2} parent=0 // pred_fallthru
    _
  %v10 = vld [vmem:[%s0] sm:$0x3]
  %vm11 = vcmask 1041408
  %v12 = vsel %vm11, %v10, 0.0
  %v13 = vrot.slane %v12, 4
  %v14 = vadd.f32 %v12, %v13
  %v15 = vrot.slane %v14, 2
  %v16 = vadd.f32 %v14, %v15
  %v17 = vrot.slane %v16, 1
  %v18 = vadd.f32 %v16, %v17
  %v19 = vmul.f32 %v10, %v10
  %v20 = vsel %vm11, %v19, 0.0
  %v21 = vrot.slane %v20, 4
  %v22 = vadd.f32 %v20, %v21
  %v23 = vrot.slane %v22, 2
  %v24 = vadd.f32 %v22, %v23
  %v25 = vrot.slane %v24, 1
  %v26 = vadd.f32 %v24, %v25
  %p27 = scmp.eq.s32.totalorder 0, 0
  // Predicated region
  $region6: #{_dice_2d.2} parent=0 // pred_check
    %p28 = pneg %p27
  $region7: #{_dice_2d.2} parent=0 // pred_check_branch
    %30 = sbr.rel (%p28) target = $region9
  $region8: #{_dice_2d.2} parent=0 // pred_region
    %31 = vst [vmem:[%s1] sm:$0x1] %v18
    %32 = vst [vmem:[%s2] sm:$0x1] %v26
  $region9: #{_dice_2d.2} parent=0 // pred_fallthru
    _
  %p33 = scmp.gt.s32.totalorder 0, 0
  // Predicated region
  $region10: #{_dice_2d.2} parent=0 // pred_check
    %p34 = pneg %p33
  $region11: #{_dice_2d.2} parent=0 // pred_check_branch
    %36 = sbr.rel (%p34) target = $region13
  $region12: #{_dice_2d.2} parent=0 // pred_region
    %v37 = vld [vmem:[%s1] sm:$0x1]
    %v38 = vadd.f32 %v37, %v18
    %39 = vst [vmem:[%s1] sm:$0x1] %v38
    %v40 = vld [vmem:[%s2] sm:$0x1]
    %v41 = vadd.f32 %v40, %v26
    %42 = vst [vmem:[%s2] sm:$0x1] %v41
  $region13: #{_dice_2d.2} parent=0 // pred_fallthru
    _
  // Predicated region
  $region14: #{_dice_2d.2} parent=0 // pred_check
    _
  $region15: #{_dice_2d.2} parent=0 // pred_check_branch
    %44 = sbr.rel (0) target = $region17
  $region16: #{_dice_2d.2} parent=0 // pred_region
    _
  $region17: #{_dice_2d.2} parent=0 // pred_fallthru
    _
  // Predicated region
  $region18: #{_dice_2d.2} parent=0 // pred_check
    _
  $region19: #{_dice_2d.2} parent=0 // pred_check_branch
    %46 = sbr.rel (0) target = $region21
  $region20: #{_dice_2d.2} parent=0 // pred_region
    _
  $region21: #{_dice_2d.2} parent=0 // pred_fallthru
    _
  // Predicated region
  $region22: #{_dice_2d.2} parent=0 // pred_check
    _
  $region23: #{_dice_2d.2} parent=0 // pred_check_branch
    %48 = sbr.rel (0) target = $region25
  $region24: #{_dice_2d.2} parent=0 // pred_region
    _
  $region25: #{_dice_2d.2} parent=0 // pred_fallthru
    _
  // Predicated region
  $region26: #{_dice_2d.2} parent=0 // pred_check
    _
  $region27: #{_dice_2d.2} parent=0 // pred_check_branch
    %50 = sbr.rel (0) target = $region29
  $region28: #{_dice_2d.2} parent=0 // pred_region
    _
  $region29: #{_dice_2d.2} parent=0 // pred_fallthru
    _

// kernel: _dice_2d.3
$region0: #{_dice_2d.3}
  #allocation0 [shape = 'u32[]', space=smem, size = 0x4, offset = 0x4, fixed_abs, tag = 'smem constant byte address 0x4 - core index']
  #allocation1 [shape = 'u32[144,128]{1,0:T(1,128)}', space=vmem, size = 0x12000, scoped, tag = 'internal scratch']
  %s0 = inlined_call_operand.vmem [shape: f32[2,128], index: 0, kind: input, shape index: {}]
  %s1 = inlined_call_operand.vmem [shape: f32[4,128], index: 1, kind: input, shape index: {}]
  %s2 = inlined_call_operand.vmem [shape: f32[2,128], index: 2, kind: output, shape index: {}]
  %s3 = sld [smem:[#allocation0]]
  $region18: #{_dice_2d.3} parent=0
    _
  %s5 = ssub.s32 1, %s3
  %s6 = scalar_select 0, %s5, %s3
  // Predicated region
  $region2: #{_dice_2d.3} parent=0 // pred_check
    _
  $region3: #{_dice_2d.3} parent=0 // pred_check_branch
    %8 = sbr.rel (0) target = $region5
  $region4: #{_dice_2d.3} parent=0 // pred_region
    _
  $region5: #{_dice_2d.3} parent=0 // pred_fallthru
    _
  // Predicated region
  $region6: #{_dice_2d.3} parent=0 // pred_check
    _
  $region7: #{_dice_2d.3} parent=0 // pred_check_branch
    %10 = sbr.rel (0) target = $region9
  $region8: #{_dice_2d.3} parent=0 // pred_region
    _
  $region9: #{_dice_2d.3} parent=0 // pred_fallthru
    _
  %v11 = vld [vmem:[%s0] sm:$0x3]
  %v12 = vld [vmem:[%s1] sm:$0x1]
  %v13 = vld [vmem:[%s1 + $0x1] sm:$0x1]
  %v14 = vld [vmem:[%s1 + $0x2] sm:$0x1]
  %v15 = vld [vmem:[%s1 + $0x3] sm:$0x1]
  %v16 = vlaneseq
  %v17 = vshrl.u32 %v16, 7
  %v18 = vsub.s32 0, %v17
  %v19 = vrot.slane %v12, %v18
  %v20 = vmul.f32 %v11, %v19
  %v21 = vlaneseq
  %v22 = vshrl.u32 %v21, 7
  %v23 = vsub.s32 0, %v22
  %v24 = vrot.slane %v13, %v23
  %v25 = vadd.f32 %v20, %v24
  %v26 = vxor.u32 %v25, 2147483648
  %v27 = vmul.f32 %v26, 1.442695
  %v28 = vpow.pop %v27
  %v29 = vadd.f32 %v28, 1.0
  %v30 = vrcp.pop %v29
  %v31 = vmul.f32 1.0, %v30
  %v32 = vlaneseq
  %v33 = vshrl.u32 %v32, 7
  %v34 = vsub.s32 0, %v33
  %v35 = vrot.slane %v15, %v34
  %v36 = vmul.f32 %v31, %v35
  %v37 = vlaneseq
  %v38 = vshrl.u32 %v37, 7
  %v39 = vsub.s32 0, %v38
  %v40 = vrot.slane %v14, %v39
  %v41 = vadd.f32 %v40, %v36
  %v42 = vmul.f32 %v11, %v41
  %43 = vst [vmem:[%s2] sm:$0x3] %v42
  // Predicated region
  $region10: #{_dice_2d.3} parent=0 // pred_check
    _
  $region11: #{_dice_2d.3} parent=0 // pred_check_branch
    %45 = sbr.rel (0) target = $region13
  $region12: #{_dice_2d.3} parent=0 // pred_region
    _
  $region13: #{_dice_2d.3} parent=0 // pred_fallthru
    _
  // Predicated region
  $region14: #{_dice_2d.3} parent=0 // pred_check
    _
  $region15: #{_dice_2d.3} parent=0 // pred_check_branch
    %47 = sbr.rel (0) target = $region17
  $region16: #{_dice_2d.3} parent=0 // pred_region
    _
  $region17: #{_dice_2d.3} parent=0 // pred_fallthru
    _

</llo_original>
